<compile_context>
chip_gen: v6e
topology: v6e:2x2x1
jax: 0.10.0
libtpu: 0.0.40
codegen_flags: <defaults>
</compile_context>

<pallas_src>
import jax
import jax.numpy as jnp
from jax.experimental import pallas as pl
from jax.experimental.pallas import tpu as pltpu


def _awl_kernel(packed_ref, out_ref):
    # packed_ref: (2, num) f32 in VMEM; row 0 = task losses, row 1 = params.
    # out_ref:    (1,)     f32 in SMEM (scalar loss sum).
    x = packed_ref[...]
    l = x[0:1, :]
    p = x[1:2, :]

    p2 = p * p
    # 0.5 * loss / sigma^2 + log(1 + sigma^2)
    # approx=True -> EUP vrcp (frees VALU); ~1e-3 relative error on the loss value.
    term = 0.5 * l * pl.reciprocal(p2, approx=True) + jnp.log1p(p2)

    out_ref[0] = jnp.sum(term)


def _awl_forward(losses, params):
    """losses: (num,) f32 task losses; params: (num,) f32 learnable weights."""
    num = losses.shape[0]
    assert params.shape == (num,)

    packed = jnp.stack(
        [losses.astype(jnp.float32), params.astype(jnp.float32)], axis=0
    )  # (2, num) — single operand, single input DMA descriptor.

    out = pl.pallas_call(
        _awl_kernel,
        out_shape=jax.ShapeDtypeStruct((1,), jnp.float32),
        in_specs=[
            pl.BlockSpec(memory_space=pltpu.MemorySpace.VMEM),  # packed losses/params
        ],
        out_specs=pl.BlockSpec(memory_space=pltpu.MemorySpace.SMEM),
        cost_estimate=pl.CostEstimate(
            flops=6 * num,
            transcendentals=2 * num,  # rcp + log1p per task
            bytes_accessed=2 * num * 4 + 4,
        ),
    )(packed)
    return out[0]


@jax.custom_vjp
def automatic_weighted_loss(losses, params):
    return _awl_forward(losses, params)


def _awl_fwd(losses, params):
    p2 = params * params  # residual reused in backward (perf-review item)
    return _awl_forward(losses, params), (losses, params, p2)


def _awl_bwd(res, g):
    # Closed-form backward (pure jnp, trivially fused by XLA):
    #   d/dloss_i = 0.5 / p_i^2
    #   d/dp_i    = -loss_i / p_i^3 + 2 p_i / (1 + p_i^2)
    losses, params, p2 = res
    inv_p2 = 1.0 / p2
    d_losses = 0.5 * inv_p2
    d_params = -losses * inv_p2 / params + 2.0 * params / (1.0 + p2)
    return (g * d_losses, g * d_params)


automatic_weighted_loss.defvjp(_awl_fwd, _awl_bwd)


if __name__ == "__main__":
    key = jax.random.PRNGKey(0)
    k1, k2 = jax.random.split(key)

    # Deterministic parameter init, matching nn.Parameter(torch.ones(num)).
    NUM = 2
    params = jnp.ones((NUM,), jnp.float32)

    # Two synthetic scalar task losses (e.g. produced by upstream task heads).
    loss1 = jnp.mean(jax.random.normal(k1, (2, 4, 16, 16)) ** 2)  # MSE-like scalar
    loss2 = jnp.mean(jax.random.uniform(k2, (2, 8)))              # BCE-like scalar
    losses = jnp.stack([loss1, loss2]).astype(jnp.float32)

    result = automatic_weighted_loss(losses, params)
    result = jax.block_until_ready(result)

    # Pure-JAX reference check of the forward semantics.
    # Tolerance loosened to cover the approx-reciprocal path (~1e-3 relative).
    ref = jnp.sum(0.5 / params**2 * losses + jnp.log(1.0 + params**2))
    assert jnp.allclose(result, ref, rtol=5e-3, atol=1e-5), (result, ref)

    # Gradient check (closed-form custom_vjp vs. autodiff of the jnp reference).
    # Gradients do not go through the approx reciprocal, so they stay tight.
    ref_fn = lambda ls, ps: jnp.sum(0.5 / ps**2 * ls + jnp.log(1.0 + ps**2))
    g_l, g_p = jax.grad(automatic_weighted_loss, argnums=(0, 1))(losses, params)
    r_l, r_p = jax.grad(ref_fn, argnums=(0, 1))(losses, params)
    assert jnp.allclose(g_l, r_l, rtol=1e-5, atol=1e-6), (g_l, r_l)
    assert jnp.allclose(g_p, r_p, rtol=1e-5, atol=1e-6), (g_p, r_p)

    print("KERNEL_OK")
</pallas_src>

<mosaic_0001>
module attributes {stable_mosaic.version = 11 : i64} {
  func.func @_awl_kernel(%arg0: memref<2x2xf32, #tpu.memory_space<vmem>>, %arg1: memref<1xf32, #tpu.memory_space<smem>>) attributes {dimension_semantics = [], scalar_prefetch = 0 : i64, scratch_operands = 0 : i64, tpu.core_type = #tpu.core_type<tc>} {
    %c0 = arith.constant 0 : index
    %c0_0 = arith.constant 0 : index
    %0 = vector.load %arg0[%c0, %c0_0] : memref<2x2xf32, #tpu.memory_space<vmem>>, vector<2x2xf32>
    %1 = vector.extract_strided_slice %0 {offsets = [0, 0], sizes = [1, 2], strides = [1, 1]} : vector<2x2xf32> to vector<1x2xf32>
    %2 = vector.extract_strided_slice %0 {offsets = [1, 0], sizes = [1, 2], strides = [1, 1]} : vector<2x2xf32> to vector<1x2xf32>
    %3 = arith.mulf %2, %2 : vector<1x2xf32>
    %cst = arith.constant 5.000000e-01 : f32
    %4 = vector.broadcast %cst : f32 to vector<1x2xf32>
    %5 = arith.mulf %4, %1 : vector<1x2xf32>
    %6 = tpu.reciprocal %3 {approx = true} : vector<1x2xf32> -> vector<1x2xf32>
    %7 = arith.mulf %5, %6 : vector<1x2xf32>
    %8 = math.log1p %3 : vector<1x2xf32>
    %9 = arith.addf %7, %8 : vector<1x2xf32>
    %10 = vector.shape_cast %9 : vector<1x2xf32> to vector<1x1x2xf32>
    %cst_1 = arith.constant dense<0.000000e+00> : vector<1xf32>
    %11 = vector.multi_reduction <add>, %10, %cst_1 [1, 2] : vector<1x1x2xf32> to vector<1xf32>
    %12 = vector.shape_cast %11 : vector<1xf32> to vector<1x1x1xf32>
    %13 = vector.extract %12[0, 0, 0] : f32 from vector<1x1x1xf32>
    %c0_2 = arith.constant 0 : index
    %14 = memref.load %arg1[%c0_2] : memref<1xf32, #tpu.memory_space<smem>>
    memref.store %13, %arg1[%c0_2] : memref<1xf32, #tpu.memory_space<smem>>
    return
  }
}

</mosaic_0001>

<llo_original>
// kernel: tpu_custom_call.1
$region0: #{tpu_custom_call.1}
  #allocation0 [shape = 'u32[]', space=smem, size = 0x4, offset = 0x4, fixed_abs, tag = 'smem constant byte address 0x4 - core index']
  #allocation1 [shape = 'u32[144,128]{1,0:T(1,128)}', space=vmem, size = 0x12000, scoped, tag = 'internal scratch']
  %s0 = inlined_call_operand.hbm [shape: f32[2,2], index: 0, kind: input, shape index: {}]
  %s1 = inlined_call_operand.hbm [shape: f32[1], index: 1, kind: output, shape index: {}]
  %s2 = sld [smem:[#allocation0]]
  $region18: #{tpu_custom_call.1} parent=0
    _
  %s4 = ssub.s32 1, %s2
  %s5 = scalar_select 0, %s4, %s2
  $region1: #{tpu_custom_call.1} parent=0
    #allocation2 [shape = 'u8[1024]{0}', space=vmem, size = 0x400, scoped, tag = 'input window, operand 0, single buffered']
    #allocation3 [shape = 's32[1]{0}', space=sflag, size = 0x4, scoped, tag = 'scoped memory for tpu_custom_call.1']
    #allocation4 [shape = 's32[1]{0}', space=sflag, size = 0x4, scoped, tag = 'scoped memory for tpu_custom_call.1']
    #allocation5 [shape = 'u8[512]{0}', space=smem, size = 0x200, scoped, tag = 'output window, operand 0, single buffered']
    %6 = vsyncpa [#allocation3], 0
    %7 = vsyncpa [#allocation4], 0
    // Predicated region
    $region2: #{tpu_custom_call.1} parent=1 // pred_check
      _
    $region3: #{tpu_custom_call.1} parent=1 // pred_check_branch
      %9 = sbr.rel (0) target = $region5
    $region4: #{tpu_custom_call.1} parent=1 // pred_region
      %s11 = ssub.s32 32, 32
      %12 = vsyncadd [#allocation3], %s11
      %s14 = sshll.u32 [#allocation2], 4
      %s15 = int_to_ptr.vmem [resolvable:$true] %s14
      %17 = dma.hbm_to_vmem [thread:$0]  %s0, 32, %s15, [#allocation3]
    $region5: #{tpu_custom_call.1} parent=1 // pred_fallthru
      _
    // Predicated region
    $region6: #{tpu_custom_call.1} parent=1 // pred_check
      _
    $region7: #{tpu_custom_call.1} parent=1 // pred_check_branch
      %19 = sbr.rel (0) target = $region9
    $region8: #{tpu_custom_call.1} parent=1 // pred_region
      %20 = dma.done [#allocation3], 32
    $region9: #{tpu_custom_call.1} parent=1 // pred_fallthru
      _
    %v21 = vld [vmem:[#allocation2] sm:$0x3]
    %v22 = vmul.f32 %v21, %v21
    %v23 = vmul.f32 %v21, 0.5
    %v24 = vrcp.pop %v22
    %v26 = vrot.slane %v24, 1
    %v28 = vmul.f32 %v23, %v26
    %v29 = vadd.f32 %v22, 1.0
    %v30 = vlog2.pop %v29
    %v31 = vmul.f32 %v30, 0.6931472
    %v32 = vmul.f32 -0.5, %v22
    %v33 = vadd.f32 %v32, 1.0
    %v34 = vmul.f32 %v33, %v22
    %v35 = vand.u32 2147483647, %v22
    %vm36 = vcmp.lt.f32.partialorder %v35, 0.0004427343
    %v37 = vsel %vm36, %v34, %v31
    %v39 = vrot.slane %v37, 1
    %v41 = vadd.f32 %v28, %v39
    %vm42 = vcmask 8192
    %v43 = vsel %vm42, %v41, 0.0
    %44 = vadd.xlane.f32.xlu0 %v43
    %v45 = vpop.xlane.xlu0 %44
    %v46 = vrot.slane %v45, 4
    %v47 = vadd.f32 %v45, %v46
    %v48 = vrot.slane %v47, 2
    %v49 = vadd.f32 %v47, %v48
    %v50 = vrot.slane %v49, 1
    %v51 = vadd.f32 %v49, %v50
    %s52 = vtos %v51
    %s53 = scalar_lea.smem [#allocation5], 0
    %54 = sst [smem:[%s53]] %s52
    // Predicated region
    $region10: #{tpu_custom_call.1} parent=1 // pred_check
      _
    $region11: #{tpu_custom_call.1} parent=1 // pred_check_branch
      %56 = sbr.rel (0) target = $region13
    $region12: #{tpu_custom_call.1} parent=1 // pred_region
      %s58 = ssub.s32 16, 16
      %59 = vsyncadd [#allocation4], %s58
      %62 = dma.smem_to_hbm [#allocation5], 16, %s1, [#allocation4]
    $region13: #{tpu_custom_call.1} parent=1 // pred_fallthru
      _
    // Predicated region
    $region14: #{tpu_custom_call.1} parent=1 // pred_check
      _
    $region15: #{tpu_custom_call.1} parent=1 // pred_check_branch
      %64 = sbr.rel (0) target = $region17
    $region16: #{tpu_custom_call.1} parent=1 // pred_region
      %65 = dma.done [#allocation4], 16
    $region17: #{tpu_custom_call.1} parent=1 // pred_fallthru
      _
    %66 = sfence
    %67 = vsyncpa [#allocation3], 1
    %68 = vsyncpa [#allocation4], 1

</llo_original>
